<compile_context>
chip_gen: v5e
topology: v5e:2x2
jax: 0.10.0
libtpu: 0.0.40
codegen_flags: <defaults>
</compile_context>

<pallas_src>
import math
import jax
import jax.numpy as jnp
from jax.experimental import pallas as pl
from jax.experimental.pallas import tpu as pltpu


# ----------------------------------------------------------------------------
# Fused Pallas kernel (all GraphConv layers + softmax)
# ----------------------------------------------------------------------------
def _make_fused_gcn_kernel(num_layers, layer_dims, tm):
    """layer_dims: static list of (fin, fout) per GraphConv layer."""

    def kernel(adj_ref, x_ref, *rest):
        # rest = (w_0, b_0, ..., w_{L-1}, b_{L-1}, o_ref, hw_scratch)
        w_refs = rest[0:2 * num_layers:2]          # bf16
        b_refs = rest[1:2 * num_layers:2]          # f32 (1, fout)
        o_ref = rest[2 * num_layers]               # (tm, nclass) f32
        hw_ref = rest[2 * num_layers + 1]          # persistent VMEM (N, nclass) bf16

        # ---- hoisted work: runs once, on the first grid step only -------------
        @pl.when(pl.program_id(0) == 0)
        def _():
            adj = adj_ref[...]                     # (N, N) bf16
            h = x_ref[...]                         # (N, F0) bf16
            for l in range(num_layers - 1):
                fin, fout = layer_dims[l]
                w = w_refs[l][...]                 # (fin, fout) bf16
                b = b_refs[l][...]                 # (1, fout) f32
                if fin <= fout:
                    # (A @ H) @ W : N^2 contraction over the narrower width fin
                    ah = jnp.dot(adj, h, preferred_element_type=jnp.float32)
                    hf = jnp.dot(ah.astype(jnp.bfloat16), w,
                                 preferred_element_type=jnp.float32) + b
                else:
                    # A @ (H @ W) : narrower inner width fout
                    hw = jnp.dot(h, w, preferred_element_type=jnp.float32)
                    hf = jnp.dot(adj, hw.astype(jnp.bfloat16),
                                 preferred_element_type=jnp.float32) + b
                # nn.Dropout between layers: identity at inference (eval mode).
                h = hf.astype(jnp.bfloat16)
            # Last layer: hoist H @ W_last once into bf16 VMEM scratch; the
            # final N^2 propagation for it is done per row tile below.
            hw_ref[...] = jnp.dot(
                h, w_refs[num_layers - 1][...],
                preferred_element_type=jnp.float32).astype(jnp.bfloat16)

        # ---- per row tile: final propagation + bias + row softmax -------------
        i = pl.program_id(0)
        row0 = pl.multiple_of(i * tm, tm)
        adj_tile = adj_ref[pl.ds(row0, tm), :]                      # (tm, N) bf16
        z = jnp.dot(adj_tile, hw_ref[...],
                    preferred_element_type=jnp.float32)             # (tm, nclass)
        z = z + b_refs[num_layers - 1][...]
        m = jnp.max(z, axis=-1, keepdims=True)
        e = jnp.exp(z - m)
        o_ref[...] = e * pl.reciprocal(jnp.sum(e, axis=-1, keepdims=True),
                                       approx=True)

    return kernel


# ----------------------------------------------------------------------------
# Wrapper
# ----------------------------------------------------------------------------
def gcn_dgl_forward(adj_norm, x, params, *, tm=None):
    """params: list of (W, b) for each GraphConv layer (W: (fin,fout), b: (fout,))."""
    N = adj_norm.shape[0]
    nfeat = x.shape[1]
    num_layers = len(params)
    nclass = params[-1][0].shape[1]
    layer_dims = [(w.shape[0], w.shape[1]) for w, _ in params]

    if tm is None:
        tm = N if N <= 512 else 256          # single grid step for small graphs
    assert N % tm == 0, "row tile must divide N (pad the graph otherwise)"
    grid = (N // tm,)

    adj_bf16 = adj_norm.astype(jnp.bfloat16)   # halve HBM traffic, 2x MXU rate
    x_bf16 = x.astype(jnp.bfloat16)

    flat_params = []
    in_specs = [
        pl.BlockSpec((N, N), lambda i: (0, 0)),        # adjacency (full, resident)
        pl.BlockSpec((N, nfeat), lambda i: (0, 0)),    # input features (full)
    ]
    for w, b in params:
        fin, fout = w.shape
        flat_params.append(w.astype(jnp.bfloat16))               # bf16 weights
        flat_params.append(b.reshape(1, fout).astype(jnp.float32))  # f32 bias
        in_specs.append(pl.BlockSpec((fin, fout), lambda i: (0, 0)))
        in_specs.append(pl.BlockSpec((1, fout), lambda i: (0, 0)))

    kernel = _make_fused_gcn_kernel(num_layers, layer_dims, tm)

    return pl.pallas_call(
        kernel,
        out_shape=jax.ShapeDtypeStruct((N, nclass), jnp.float32),
        grid=grid,
        in_specs=in_specs,
        out_specs=pl.BlockSpec((tm, nclass), lambda i: (i, 0)),
        scratch_shapes=[pltpu.VMEM((N, nclass), jnp.bfloat16)],
        compiler_params=pltpu.CompilerParams(
            # scratch written at step 0 is read by later steps -> "arbitrary"
            dimension_semantics=("arbitrary",),
        ),
    )(adj_bf16, x_bf16, *flat_params)


# ----------------------------------------------------------------------------
# Pure-JAX reference (f32) for correctness checking
# ----------------------------------------------------------------------------
def gcn_dgl_reference(adj_norm, x, params):
    h = x
    for w, b in params:
        h = adj_norm @ h @ w + b[None, :]
    return jax.nn.softmax(h, axis=1)


# ----------------------------------------------------------------------------
# Parameter / graph construction (glue, plain JAX)
# ----------------------------------------------------------------------------
def xavier_uniform(key, fan_in, fan_out):
    limit = math.sqrt(6.0 / (fan_in + fan_out))
    return jax.random.uniform(key, (fan_in, fan_out), jnp.float32, -limit, limit)


def init_params(key, nfeat, nlayers, nhid, nclass):
    # GCN_dgl builds nlayers+1 GraphConv layers: nfeat->nhid, (nhid->nhid)*(nlayers-1), nhid->nclass
    dims = [nfeat] + [nhid] * nlayers + [nclass]
    params = []
    for fin, fout in zip(dims[:-1], dims[1:]):
        key, sub = jax.random.split(key)
        w = xavier_uniform(sub, fin, fout)
        b = jnp.zeros((fout,), jnp.float32)
        params.append((w, b))
    return params


def build_normalized_adj(key, n_nodes, edge_prob=0.1):
    # random symmetric adjacency, no self-loops (DGL GraphConv does not add them)
    a = (jax.random.uniform(key, (n_nodes, n_nodes)) < edge_prob).astype(jnp.float32)
    a = jnp.maximum(a, a.T)
    a = a * (1.0 - jnp.eye(n_nodes, dtype=jnp.float32))
    deg = jnp.maximum(a.sum(axis=1), 1.0)   # DGL clamps degree to >= 1
    d_inv_sqrt = 1.0 / jnp.sqrt(deg)
    return a * d_inv_sqrt[:, None] * d_inv_sqrt[None, :]


# ----------------------------------------------------------------------------
if __name__ == "__main__":
    key = jax.random.PRNGKey(0)
    k_adj, k_x, k_p = jax.random.split(key, 3)

    N = 128          # number of graph nodes
    nfeat = 16
    nhid = 32
    nclass = 8
    nlayers = 2      # -> 3 GraphConv layers total
    dropout = 0.5    # identity at inference

    adj_norm = build_normalized_adj(k_adj, N, edge_prob=0.1)
    x = jax.random.normal(k_x, (N, nfeat), jnp.float32)
    params = init_params(k_p, nfeat, nlayers, nhid, nclass)

    out = gcn_dgl_forward(adj_norm, x, params)
    out = jax.block_until_ready(out)

    assert out.shape == (N, nclass)
    assert bool(jnp.all(jnp.isfinite(out)))
    # softmax rows should sum to ~1 (tolerance covers the approx EUP reciprocal)
    assert bool(jnp.allclose(out.sum(axis=1), 1.0, atol=5e-3))
    # match the f32 pure-JAX reference (tolerance covers bf16 MXU inputs)
    ref = gcn_dgl_reference(adj_norm, x, params)
    assert bool(jnp.allclose(out, ref, atol=2e-2)), \
        f"max abs err {float(jnp.max(jnp.abs(out - ref)))}"

    print("KERNEL_OK")
</pallas_src>

<mosaic_0001>
module attributes {stable_mosaic.version = 11 : i64} {
  func.func @kernel(%arg0: i32, %arg1: memref<128x128xbf16, #tpu.memory_space<vmem>>, %arg2: memref<128x16xbf16, #tpu.memory_space<vmem>>, %arg3: memref<16x32xbf16, #tpu.memory_space<vmem>>, %arg4: memref<1x32xf32, #tpu.memory_space<vmem>>, %arg5: memref<32x32xbf16, #tpu.memory_space<vmem>>, %arg6: memref<1x32xf32, #tpu.memory_space<vmem>>, %arg7: memref<32x8xbf16, #tpu.memory_space<vmem>>, %arg8: memref<1x8xf32, #tpu.memory_space<vmem>>, %arg9: memref<128x8xf32, #tpu.memory_space<vmem>>, %arg10: memref<128x8xbf16, #tpu.memory_space<vmem>>) attributes {dimension_semantics = [#tpu.dimension_semantics<arbitrary>], iteration_bounds = array<i64: 1>, scalar_prefetch = 0 : i64, scratch_operands = 1 : i64, tpu.core_type = #tpu.core_type<tc>, window_params = [{pipeline_mode = #tpu.pipeline_mode<synchronous>, transform_indices = @transform_0, window_bounds = array<i64: 128, 128>}, {pipeline_mode = #tpu.pipeline_mode<synchronous>, transform_indices = @transform_1, window_bounds = array<i64: 128, 16>}, {pipeline_mode = #tpu.pipeline_mode<synchronous>, transform_indices = @transform_2, window_bounds = array<i64: 16, 32>}, {pipeline_mode = #tpu.pipeline_mode<synchronous>, transform_indices = @transform_3, window_bounds = array<i64: 1, 32>}, {pipeline_mode = #tpu.pipeline_mode<synchronous>, transform_indices = @transform_4, window_bounds = array<i64: 32, 32>}, {pipeline_mode = #tpu.pipeline_mode<synchronous>, transform_indices = @transform_5, window_bounds = array<i64: 1, 32>}, {pipeline_mode = #tpu.pipeline_mode<synchronous>, transform_indices = @transform_6, window_bounds = array<i64: 32, 8>}, {pipeline_mode = #tpu.pipeline_mode<synchronous>, transform_indices = @transform_7, window_bounds = array<i64: 1, 8>}, {transform_indices = @transform_8, window_bounds = array<i64: 128, 8>}]} {
    %c0_i32 = arith.constant 0 : i32
    %0 = arith.cmpi eq, %arg0, %c0_i32 : i32
    %1 = arith.extui %0 : i1 to i32
    %c0_i32_0 = arith.constant 0 : i32
    %2 = arith.cmpi ne, %1, %c0_i32_0 : i32
    scf.if %2 {
      %c0_9 = arith.constant 0 : index
      %c0_10 = arith.constant 0 : index
      %23 = vector.load %arg1[%c0_9, %c0_10] : memref<128x128xbf16, #tpu.memory_space<vmem>>, vector<128x128xbf16>
      %c0_11 = arith.constant 0 : index
      %c0_12 = arith.constant 0 : index
      %24 = vector.load %arg2[%c0_11, %c0_12] : memref<128x16xbf16, #tpu.memory_space<vmem>>, vector<128x16xbf16>
      %c0_13 = arith.constant 0 : index
      %c0_14 = arith.constant 0 : index
      %25 = vector.load %arg3[%c0_13, %c0_14] : memref<16x32xbf16, #tpu.memory_space<vmem>>, vector<16x32xbf16>
      %c0_15 = arith.constant 0 : index
      %c0_16 = arith.constant 0 : index
      %26 = vector.load %arg4[%c0_15, %c0_16] : memref<1x32xf32, #tpu.memory_space<vmem>>, vector<1x32xf32>
      %cst_17 = arith.constant dense<0.000000e+00> : vector<128x16xf32>
      %27 = tpu.matmul %23, %24, %cst_17 {dimension_numbers = #tpu.dot_dimension_numbers<[1], [0], [0], [1], [0, 0, 1, 1], [], []>} : vector<128x128xbf16>, vector<128x16xbf16>, vector<128x16xf32> -> vector<128x16xf32>
      %28 = arith.truncf %27 : vector<128x16xf32> to vector<128x16xbf16>
      %cst_18 = arith.constant dense<0.000000e+00> : vector<128x32xf32>
      %29 = tpu.matmul %28, %25, %cst_18 {dimension_numbers = #tpu.dot_dimension_numbers<[1], [0], [0], [1], [0, 0, 1, 1], [], []>} : vector<128x16xbf16>, vector<16x32xbf16>, vector<128x32xf32> -> vector<128x32xf32>
      %30 = vector.broadcast %26 : vector<1x32xf32> to vector<128x32xf32>
      %31 = arith.addf %29, %30 : vector<128x32xf32>
      %32 = arith.truncf %31 : vector<128x32xf32> to vector<128x32xbf16>
      %c0_19 = arith.constant 0 : index
      %c0_20 = arith.constant 0 : index
      %33 = vector.load %arg5[%c0_19, %c0_20] : memref<32x32xbf16, #tpu.memory_space<vmem>>, vector<32x32xbf16>
      %c0_21 = arith.constant 0 : index
      %c0_22 = arith.constant 0 : index
      %34 = vector.load %arg6[%c0_21, %c0_22] : memref<1x32xf32, #tpu.memory_space<vmem>>, vector<1x32xf32>
      %cst_23 = arith.constant dense<0.000000e+00> : vector<128x32xf32>
      %35 = tpu.matmul %23, %32, %cst_23 {dimension_numbers = #tpu.dot_dimension_numbers<[1], [0], [0], [1], [0, 0, 1, 1], [], []>} : vector<128x128xbf16>, vector<128x32xbf16>, vector<128x32xf32> -> vector<128x32xf32>
      %36 = arith.truncf %35 : vector<128x32xf32> to vector<128x32xbf16>
      %cst_24 = arith.constant dense<0.000000e+00> : vector<128x32xf32>
      %37 = tpu.matmul %36, %33, %cst_24 {dimension_numbers = #tpu.dot_dimension_numbers<[1], [0], [0], [1], [0, 0, 1, 1], [], []>} : vector<128x32xbf16>, vector<32x32xbf16>, vector<128x32xf32> -> vector<128x32xf32>
      %38 = vector.broadcast %34 : vector<1x32xf32> to vector<128x32xf32>
      %39 = arith.addf %37, %38 : vector<128x32xf32>
      %40 = arith.truncf %39 : vector<128x32xf32> to vector<128x32xbf16>
      %c0_25 = arith.constant 0 : index
      %c0_26 = arith.constant 0 : index
      %41 = vector.load %arg7[%c0_25, %c0_26] : memref<32x8xbf16, #tpu.memory_space<vmem>>, vector<32x8xbf16>
      %cst_27 = arith.constant dense<0.000000e+00> : vector<128x8xf32>
      %42 = tpu.matmul %40, %41, %cst_27 {dimension_numbers = #tpu.dot_dimension_numbers<[1], [0], [0], [1], [0, 0, 1, 1], [], []>} : vector<128x32xbf16>, vector<32x8xbf16>, vector<128x8xf32> -> vector<128x8xf32>
      %43 = arith.truncf %42 : vector<128x8xf32> to vector<128x8xbf16>
      %c0_28 = arith.constant 0 : index
      %c0_29 = arith.constant 0 : index
      %44 = vector.load %arg10[%c0_28, %c0_29] : memref<128x8xbf16, #tpu.memory_space<vmem>>, vector<128x8xbf16>
      tpu.vector_store %arg10[%c0_28, %c0_29], %43 {strides = array<i32>} : memref<128x8xbf16, #tpu.memory_space<vmem>>, vector<128x8xbf16>,
    } else {
    }
    %c128_i32 = arith.constant 128 : i32
    %3 = arith.muli %arg0, %c128_i32 : i32
    %4 = tpu.assume_multiple %3, 128 : i32
    %5 = arith.index_cast %4 : i32 to index
    %c0 = arith.constant 0 : index
    %6 = vector.load %arg1[%5, %c0] : memref<128x128xbf16, #tpu.memory_space<vmem>>, vector<128x128xbf16>
    %c0_1 = arith.constant 0 : index
    %c0_2 = arith.constant 0 : index
    %7 = vector.load %arg10[%c0_1, %c0_2] : memref<128x8xbf16, #tpu.memory_space<vmem>>, vector<128x8xbf16>
    %cst = arith.constant dense<0.000000e+00> : vector<128x8xf32>
    %8 = tpu.matmul %6, %7, %cst {dimension_numbers = #tpu.dot_dimension_numbers<[1], [0], [0], [1], [0, 0, 1, 1], [], []>} : vector<128x128xbf16>, vector<128x8xbf16>, vector<128x8xf32> -> vector<128x8xf32>
    %c0_3 = arith.constant 0 : index
    %c0_4 = arith.constant 0 : index
    %9 = vector.load %arg8[%c0_3, %c0_4] : memref<1x8xf32, #tpu.memory_space<vmem>>, vector<1x8xf32>
    %10 = vector.broadcast %9 : vector<1x8xf32> to vector<128x8xf32>
    %11 = arith.addf %8, %10 : vector<128x8xf32>
    %cst_5 = arith.constant dense<0xFF800000> : vector<128xf32>
    %12 = vector.multi_reduction <maximumf>, %11, %cst_5 [1] : vector<128x8xf32> to vector<128xf32>
    %13 = vector.shape_cast %12 : vector<128xf32> to vector<128x1xf32>
    %14 = vector.broadcast %13 : vector<128x1xf32> to vector<128x8xf32>
    %15 = arith.subf %11, %14 : vector<128x8xf32>
    %16 = math.exp %15 : vector<128x8xf32>
    %cst_6 = arith.constant dense<0.000000e+00> : vector<128xf32>
    %17 = vector.multi_reduction <add>, %16, %cst_6 [1] : vector<128x8xf32> to vector<128xf32>
    %18 = vector.shape_cast %17 : vector<128xf32> to vector<128x1xf32>
    %19 = tpu.reciprocal %18 {approx = true} : vector<128x1xf32> -> vector<128x1xf32>
    %20 = vector.broadcast %19 : vector<128x1xf32> to vector<128x8xf32>
    %21 = arith.mulf %16, %20 : vector<128x8xf32>
    %c0_7 = arith.constant 0 : index
    %c0_8 = arith.constant 0 : index
    %22 = vector.load %arg9[%c0_7, %c0_8] : memref<128x8xf32, #tpu.memory_space<vmem>>, vector<128x8xf32>
    tpu.vector_store %arg9[%c0_7, %c0_8], %21 {strides = array<i32>} : memref<128x8xf32, #tpu.memory_space<vmem>>, vector<128x8xf32>,
    return
  }
  func.func @transform_0(%arg0: i32) -> (i32, i32) {
    %c0_i32 = arith.constant 0 : i32
    %c0_i32_0 = arith.constant 0 : i32
    %c0_i32_1 = arith.constant 0 : i32
    return %c0_i32, %c0_i32_0 : i32, i32
  }
  func.func @transform_1(%arg0: i32) -> (i32, i32) {
    %c0_i32 = arith.constant 0 : i32
    %c0_i32_0 = arith.constant 0 : i32
    %c0_i32_1 = arith.constant 0 : i32
    return %c0_i32, %c0_i32_0 : i32, i32
  }
  func.func @transform_2(%arg0: i32) -> (i32, i32) {
    %c0_i32 = arith.constant 0 : i32
    %c0_i32_0 = arith.constant 0 : i32
    %c0_i32_1 = arith.constant 0 : i32
    return %c0_i32, %c0_i32_0 : i32, i32
  }
  func.func @transform_3(%arg0: i32) -> (i32, i32) {
    %c0_i32 = arith.constant 0 : i32
    %c0_i32_0 = arith.constant 0 : i32
    %c0_i32_1 = arith.constant 0 : i32
    return %c0_i32, %c0_i32_0 : i32, i32
  }
  func.func @transform_4(%arg0: i32) -> (i32, i32) {
    %c0_i32 = arith.constant 0 : i32
    %c0_i32_0 = arith.constant 0 : i32
    %c0_i32_1 = arith.constant 0 : i32
    return %c0_i32, %c0_i32_0 : i32, i32
  }
  func.func @transform_5(%arg0: i32) -> (i32, i32) {
    %c0_i32 = arith.constant 0 : i32
    %c0_i32_0 = arith.constant 0 : i32
    %c0_i32_1 = arith.constant 0 : i32
    return %c0_i32, %c0_i32_0 : i32, i32
  }
  func.func @transform_6(%arg0: i32) -> (i32, i32) {
    %c0_i32 = arith.constant 0 : i32
    %c0_i32_0 = arith.constant 0 : i32
    %c0_i32_1 = arith.constant 0 : i32
    return %c0_i32, %c0_i32_0 : i32, i32
  }
  func.func @transform_7(%arg0: i32) -> (i32, i32) {
    %c0_i32 = arith.constant 0 : i32
    %c0_i32_0 = arith.constant 0 : i32
    %c0_i32_1 = arith.constant 0 : i32
    return %c0_i32, %c0_i32_0 : i32, i32
  }
  func.func @transform_8(%arg0: i32) -> (i32, i32) {
    %c0_i32 = arith.constant 0 : i32
    %c0_i32_0 = arith.constant 0 : i32
    return %arg0, %c0_i32 : i32, i32
  }
}

</mosaic_0001>

<llo_original>
// kernel: tpu_custom_call.1
$region0: #{tpu_custom_call.1}
  #allocation0 [shape = 'u32[]', space=smem, size = 0x4, offset = 0x4, fixed_abs, tag = 'smem constant byte address 0x4 - core index']
  #allocation1 [shape = 'u32[72,128]{1,0:T(1,128)}', space=vmem, size = 0x9000, scoped, tag = 'internal scratch']
  #allocation2 [shape = 'bf16[128,8]{1,0:T(8,128)(2,1)}', space=vmem, size = 0x8000, scoped, tag = 'scratch operand']
  %s0 = inlined_call_operand.vmem [shape: bf16[128,128], index: 0, kind: input, shape index: {}]
  %s1 = inlined_call_operand.vmem [shape: bf16[128,16], index: 1, kind: input, shape index: {}]
  %s2 = inlined_call_operand.hbm [shape: bf16[16,32], index: 2, kind: input, shape index: {}]
  %s3 = inlined_call_operand.vmem [shape: f32[1,32], index: 3, kind: input, shape index: {}]
  %s4 = inlined_call_operand.vmem [shape: bf16[32,32], index: 4, kind: input, shape index: {}]
  %s5 = inlined_call_operand.vmem [shape: f32[1,32], index: 5, kind: input, shape index: {}]
  %s6 = inlined_call_operand.vmem [shape: bf16[32,8], index: 6, kind: input, shape index: {}]
  %s7 = inlined_call_operand.vmem [shape: f32[1,8], index: 7, kind: input, shape index: {}]
  %s8 = inlined_call_operand.vmem [shape: f32[128,8], index: 8, kind: output, shape index: {}]
  %s9 = sld [smem:[#allocation0]]
  $region50: #{tpu_custom_call.1} parent=0
    _
  %s11 = ssub.s32 1, %s9
  %s12 = scalar_select 0, %s11, %s9
  $region1: #{tpu_custom_call.1} parent=0
    #allocation3 [shape = 'u8[4096]{0}', space=vmem, size = 0x1000, scoped, tag = 'input window, operand 2, single buffered']
    #allocation4 [shape = 's32[1]{0}', space=sflag, size = 0x4, scoped, tag = 'scoped memory for tpu_custom_call.1']
    %13 = vsyncpa [#allocation4], 0
    // Predicated region
    $region2: #{tpu_custom_call.1} parent=1 // pred_check
      _
    $region3: #{tpu_custom_call.1} parent=1 // pred_check_branch
      %15 = sbr.rel (0) target = $region5
    $region4: #{tpu_custom_call.1} parent=1 // pred_region
      _
    $region5: #{tpu_custom_call.1} parent=1 // pred_fallthru
      _
    // Predicated region
    $region6: #{tpu_custom_call.1} parent=1 // pred_check
      _
    $region7: #{tpu_custom_call.1} parent=1 // pred_check_branch
      %17 = sbr.rel (0) target = $region9
    $region8: #{tpu_custom_call.1} parent=1 // pred_region
      _
    $region9: #{tpu_custom_call.1} parent=1 // pred_fallthru
      _
    // Predicated region
    $region10: #{tpu_custom_call.1} parent=1 // pred_check
      _
    $region11: #{tpu_custom_call.1} parent=1 // pred_check_branch
      %19 = sbr.rel (0) target = $region13
    $region12: #{tpu_custom_call.1} parent=1 // pred_region
      %21 = vsyncadd [#allocation4], 0
      %s22 = sshll.u32 %s2, 4
      %s23 = int_to_ptr.hbm [resolvable:$true] %s22
      %s24 = sshll.u32 [#allocation3], 4
      %s25 = int_to_ptr.vmem [resolvable:$true] %s24
      %30 = dma.hbm_to_vmem [thread:$0]  %s23, 128, %s25, [#allocation4], 64, 64, 4
    $region13: #{tpu_custom_call.1} parent=1 // pred_fallthru
      _
    // Predicated region
    $region14: #{tpu_custom_call.1} parent=1 // pred_check
      _
    $region15: #{tpu_custom_call.1} parent=1 // pred_check_branch
      %32 = sbr.rel (0) target = $region17
    $region16: #{tpu_custom_call.1} parent=1 // pred_region
      _
    $region17: #{tpu_custom_call.1} parent=1 // pred_fallthru
      _
    // Predicated region
    $region18: #{tpu_custom_call.1} parent=1 // pred_check
      _
    $region19: #{tpu_custom_call.1} parent=1 // pred_check_branch
      %34 = sbr.rel (0) target = $region21
    $region20: #{tpu_custom_call.1} parent=1 // pred_region
      _
    $region21: #{tpu_custom_call.1} parent=1 // pred_fallthru
      _
    // Predicated region
    $region22: #{tpu_custom_call.1} parent=1 // pred_check
      _
    $region23: #{tpu_custom_call.1} parent=1 // pred_check_branch
      %36 = sbr.rel (0) target = $region25
    $region24: #{tpu_custom_call.1} parent=1 // pred_region
      _
    $region25: #{tpu_custom_call.1} parent=1 // pred_fallthru
      _
    // Predicated region
    $region26: #{tpu_custom_call.1} parent=1 // pred_check
      _
    $region27: #{tpu_custom_call.1} parent=1 // pred_check_branch
      %38 = sbr.rel (0) target = $region29
    $region28: #{tpu_custom_call.1} parent=1 // pred_region
      _
    $region29: #{tpu_custom_call.1} parent=1 // pred_fallthru
      _
    // Predicated region
    $region30: #{tpu_custom_call.1} parent=1 // pred_check
      _
    $region31: #{tpu_custom_call.1} parent=1 // pred_check_branch
      %40 = sbr.rel (0) target = $region33
    $region32: #{tpu_custom_call.1} parent=1 // pred_region
      _
    $region33: #{tpu_custom_call.1} parent=1 // pred_fallthru
      _
    // Predicated region
    $region34: #{tpu_custom_call.1} parent=1 // pred_check
      _
    $region35: #{tpu_custom_call.1} parent=1 // pred_check_branch
      %42 = sbr.rel (0) target = $region37
    $region36: #{tpu_custom_call.1} parent=1 // pred_region
      %44 = dma.done [#allocation4], 128
    $region37: #{tpu_custom_call.1} parent=1 // pred_fallthru
      _
    %p46 = scmp.eq.s32.totalorder 0, 0
    // Predicated region
    $region38: #{tpu_custom_call.1} parent=1 // pred_check
      %p47 = pneg %p46
    $region39: #{tpu_custom_call.1} parent=1 // pred_check_branch
      %49 = sbr.rel (%p47) target = $region41
    $region40: #{tpu_custom_call.1} parent=1 // pred_region
      %v50 = vld [vmem:[%s0] sm:$0xf]
      %v51 = vld [vmem:[%s0 + $0x4] sm:$0xf]
      %v52 = vld [vmem:[%s0 + $0x8] sm:$0xf]
      %v53 = vld [vmem:[%s0 + $0xc] sm:$0xf]
      %v54 = vld [vmem:[%s0 + $0x10] sm:$0xf]
      %v55 = vld [vmem:[%s0 + $0x14] sm:$0xf]
      %v56 = vld [vmem:[%s0 + $0x18] sm:$0xf]
      %v57 = vld [vmem:[%s0 + $0x1c] sm:$0xf]
      %v58 = vld [vmem:[%s0 + $0x20] sm:$0xf]
      %v59 = vld [vmem:[%s0 + $0x24] sm:$0xf]
      %v60 = vld [vmem:[%s0 + $0x28] sm:$0xf]
      %v61 = vld [vmem:[%s0 + $0x2c] sm:$0xf]
      %v62 = vld [vmem:[%s0 + $0x30] sm:$0xf]
      %v63 = vld [vmem:[%s0 + $0x34] sm:$0xf]
      %v64 = vld [vmem:[%s0 + $0x38] sm:$0xf]
      %v65 = vld [vmem:[%s0 + $0x3c] sm:$0xf]
      %v66 = vld [vmem:[%s1] sm:$0xf]
      %v67 = vld [vmem:[%s1 + $0x4] sm:$0xf]
      %v68 = vld [vmem:[%s1 + $0x8] sm:$0xf]
      %v69 = vld [vmem:[%s1 + $0xc] sm:$0xf]
      %v70 = vld [vmem:[%s1 + $0x10] sm:$0xf]
      %v71 = vld [vmem:[%s1 + $0x14] sm:$0xf]
      %v72 = vld [vmem:[%s1 + $0x18] sm:$0xf]
      %v73 = vld [vmem:[%s1 + $0x1c] sm:$0xf]
      %v74 = vld [vmem:[%s1 + $0x20] sm:$0xf]
      %v75 = vld [vmem:[%s1 + $0x24] sm:$0xf]
      %v76 = vld [vmem:[%s1 + $0x28] sm:$0xf]
      %v77 = vld [vmem:[%s1 + $0x2c] sm:$0xf]
      %v78 = vld [vmem:[%s1 + $0x30] sm:$0xf]
      %v79 = vld [vmem:[%s1 + $0x34] sm:$0xf]
      %v80 = vld [vmem:[%s1 + $0x38] sm:$0xf]
      %v81 = vld [vmem:[%s1 + $0x3c] sm:$0xf]
      %v82 = vld [vmem:[#allocation3] sm:$0xf]
      %v83 = vld [vmem:[#allocation3 + $0x4] sm:$0xf]
      %v84 = vld [vmem:[%s3] sm:$0x1]
      %v101 = vunpack.c.l.b16 %v50
      %v102 = vunpack.c.l.b16 %v51
      %v103 = vunpack.c.l.b16 %v52
      %v104 = vunpack.c.l.b16 %v53
      %v105 = vunpack.c.l.b16 %v54
      %v106 = vunpack.c.l.b16 %v55
      %v107 = vunpack.c.l.b16 %v56
      %v108 = vunpack.c.l.b16 %v57
      %v109 = vunpack.c.l.b16 %v58
      %v110 = vunpack.c.l.b16 %v59
      %v111 = vunpack.c.l.b16 %v60
      %v112 = vunpack.c.l.b16 %v61
      %v113 = vunpack.c.l.b16 %v62
      %v114 = vunpack.c.l.b16 %v63
      %v115 = vunpack.c.l.b16 %v64
      %v116 = vunpack.c.l.b16 %v65
      %v117 = vpack.c.b16 %v102, %v101
      %v118 = vpack.c.b16 %v104, %v103
      %v119 = vpack.c.b16 %v106, %v105
      %v120 = vpack.c.b16 %v108, %v107
      %v121 = vpack.c.b16 %v110, %v109
      %v122 = vpack.c.b16 %v112, %v111
      %v123 = vpack.c.b16 %v114, %v113
      %v124 = vpack.c.b16 %v116, %v115
      %v149 = vunpack.c.l.b16 %v66
      %v150 = vunpack.c.l.b16 %v67
      %v151 = vunpack.c.l.b16 %v68
      %v152 = vunpack.c.l.b16 %v69
      %v153 = vunpack.c.l.b16 %v70
      %v154 = vunpack.c.l.b16 %v71
      %v155 = vunpack.c.l.b16 %v72
      %v156 = vunpack.c.l.b16 %v73
      %v157 = vunpack.c.l.b16 %v74
      %v158 = vunpack.c.l.b16 %v75
      %v159 = vunpack.c.l.b16 %v76
      %v160 = vunpack.c.l.b16 %v77
      %v161 = vunpack.c.l.b16 %v78
      %v162 = vunpack.c.l.b16 %v79
      %v163 = vunpack.c.l.b16 %v80
      %v164 = vunpack.c.l.b16 %v81
      %v165 = vpack.c.b16 %v150, %v149
      %v166 = vpack.c.b16 %v152, %v151
      %v167 = vpack.c.b16 %v154, %v153
      %v168 = vpack.c.b16 %v156, %v155
      %v169 = vpack.c.b16 %v158, %v157
      %v170 = vpack.c.b16 %v160, %v159
      %v171 = vpack.c.b16 %v162, %v161
      %v172 = vpack.c.b16 %v164, %v163
      %181 = vmatpush.bf16.msra.mxu0 %v172
      %182 = vmatpush.bf16.msra.mxu0 %v171
      %183 = vmatpush.bf16.msra.mxu0 %v170
      %184 = vmatpush.bf16.msra.mxu0 %v169
      %185 = vmatpush.bf16.msra.mxu0 %v168
      %186 = vmatpush.bf16.msra.mxu0 %v167
      %187 = vmatpush.bf16.msra.mxu0 %v166
      %188 = vmatpush.bf16.msra.mxu0 %v165
      %189 = vmatmul.bf16.gmra.mxu0 %v117
      %v190 = vpop.f32.mrf.mxu0
      %v191 = vadd.f32 0.0, %v190
      %v192 = vpop.f32.mrf.mxu0
      %v193 = vadd.f32 0.0, %v192
      %194 = vmatmul.bf16.gmra.mxu0 %v118
      %v195 = vpop.f32.mrf.mxu0
      %v196 = vadd.f32 0.0, %v195
      %v197 = vpop.f32.mrf.mxu0
      %v198 = vadd.f32 0.0, %v197
      %199 = vmatmul.bf16.gmra.mxu0 %v119
      %v200 = vpop.f32.mrf.mxu0
      %v201 = vadd.f32 0.0, %v200
      %v202 = vpop.f32.mrf.mxu0
      %v203 = vadd.f32 0.0, %v202
      %204 = vmatmul.bf16.gmra.mxu0 %v120
      %v205 = vpop.f32.mrf.mxu0
      %v206 = vadd.f32 0.0, %v205
      %v207 = vpop.f32.mrf.mxu0
      %v208 = vadd.f32 0.0, %v207
      %209 = vmatmul.bf16.gmra.mxu0 %v121
      %v210 = vpop.f32.mrf.mxu0
      %v211 = vadd.f32 0.0, %v210
      %v212 = vpop.f32.mrf.mxu0
      %v213 = vadd.f32 0.0, %v212
      %214 = vmatmul.bf16.gmra.mxu0 %v122
      %v215 = vpop.f32.mrf.mxu0
      %v216 = vadd.f32 0.0, %v215
      %v217 = vpop.f32.mrf.mxu0
      %v218 = vadd.f32 0.0, %v217
      %219 = vmatmul.bf16.gmra.mxu0 %v123
      %v220 = vpop.f32.mrf.mxu0
      %v221 = vadd.f32 0.0, %v220
      %v222 = vpop.f32.mrf.mxu0
      %v223 = vadd.f32 0.0, %v222
      %224 = vmatmul.bf16.gmra.mxu0 %v124
      %v225 = vpop.f32.mrf.mxu0
      %v226 = vadd.f32 0.0, %v225
      %v227 = vpop.f32.mrf.mxu0
      %v228 = vadd.f32 0.0, %v227
      %229 = vdwg.mxu0
      %v230 = vpack.c.bf16 %v193, %v191
      %v231 = vpack.c.bf16 %v198, %v196
      %v232 = vpack.c.bf16 %v203, %v201
      %v233 = vpack.c.bf16 %v208, %v206
      %v234 = vpack.c.bf16 %v213, %v211
      %v235 = vpack.c.bf16 %v218, %v216
      %v236 = vpack.c.bf16 %v223, %v221
      %v237 = vpack.c.bf16 %v228, %v226
      %v239 = vperm.slane %v84, 0
      %v243 = vunpack.c.l.b16 %v82
      %v244 = vunpack.c.l.b16 %v83
      %v245 = vpack.c.b16 %v244, %v243
      %vm247 = vcmask 130048
      %v249 = vsel %vm247, %v230, 0
      %v252 = vsel %vm247, %v231, 0
      %v255 = vsel %vm247, %v232, 0
      %v258 = vsel %vm247, %v233, 0
      %v261 = vsel %vm247, %v234, 0
      %v264 = vsel %vm247, %v235, 0
      %v267 = vsel %vm247, %v236, 0
      %v270 = vsel %vm247, %v237, 0
      %272 = vmatpush.bf16.msra.mxu0 0
      %273 = vmatpush.bf16.msra.mxu0 0
      %274 = vmatpush.bf16.msra.mxu0 0
      %275 = vmatpush.bf16.msra.mxu0 0
      %276 = vmatpush.bf16.msra.mxu0 0
      %277 = vmatpush.bf16.msra.mxu0 0
      %278 = vmatpush.bf16.msra.mxu0 0
      %279 = vmatpush.bf16.msra.mxu0 %v245
      %280 = vmatmul.bf16.gmra.mxu0 %v249
      %v281 = vpop.f32.mrf.mxu0
      %v282 = vadd.f32 %v239, %v281
      %v283 = vpop.f32.mrf.mxu0
      %v284 = vadd.f32 %v239, %v283
      %285 = vmatmul.bf16.gmra.mxu0 %v252
      %v286 = vpop.f32.mrf.mxu0
      %v287 = vadd.f32 %v239, %v286
      %v288 = vpop.f32.mrf.mxu0
      %v289 = vadd.f32 %v239, %v288
      %290 = vmatmul.bf16.gmra.mxu0 %v255
      %v291 = vpop.f32.mrf.mxu0
      %v292 = vadd.f32 %v239, %v291
      %v293 = vpop.f32.mrf.mxu0
      %v294 = vadd.f32 %v239, %v293
      %295 = vmatmul.bf16.gmra.mxu0 %v258
      %v296 = vpop.f32.mrf.mxu0
      %v297 = vadd.f32 %v239, %v296
      %v298 = vpop.f32.mrf.mxu0
      %v299 = vadd.f32 %v239, %v298
      %300 = vmatmul.bf16.gmra.mxu0 %v261
      %v301 = vpop.f32.mrf.mxu0
      %v302 = vadd.f32 %v239, %v301
      %v303 = vpop.f32.mrf.mxu0
      %v304 = vadd.f32 %v239, %v303
      %305 = vmatmul.bf16.gmra.mxu0 %v264
      %v306 = vpop.f32.mrf.mxu0
      %v307 = vadd.f32 %v239, %v306
      %v308 = vpop.f32.mrf.mxu0
      %v309 = vadd.f32 %v239, %v308
      %310 = vmatmul.bf16.gmra.mxu0 %v267
      %v311 = vpop.f32.mrf.mxu0
      %v312 = vadd.f32 %v239, %v311
      %v313 = vpop.f32.mrf.mxu0
      %v314 = vadd.f32 %v239, %v313
      %315 = vmatmul.bf16.gmra.mxu0 %v270
      %v316 = vpop.f32.mrf.mxu0
      %v317 = vadd.f32 %v239, %v316
      %v318 = vpop.f32.mrf.mxu0
      %v319 = vadd.f32 %v239, %v318
      %320 = vdwg.mxu0
      %v321 = vpack.c.bf16 %v284, %v282
      %v322 = vpack.c.bf16 %v289, %v287
      %v323 = vpack.c.bf16 %v294, %v292
      %v324 = vpack.c.bf16 %v299, %v297
      %v325 = vpack.c.bf16 %v304, %v302
      %v326 = vpack.c.bf16 %v309, %v307
      %v327 = vpack.c.bf16 %v314, %v312
      %v328 = vpack.c.bf16 %v319, %v317
      %v329 = vld [vmem:[%s4] sm:$0xf]
      %v330 = vld [vmem:[%s4 + $0x4] sm:$0xf]
      %v331 = vld [vmem:[%s4 + $0x8] sm:$0xf]
      %v332 = vld [vmem:[%s4 + $0xc] sm:$0xf]
      %v333 = vld [vmem:[%s5] sm:$0x1]
      %334 = vmatpush.bf16.msra.mxu0 %v328
      %335 = vmatpush.bf16.msra.mxu0 %v327
      %336 = vmatpush.bf16.msra.mxu0 %v326
      %337 = vmatpush.bf16.msra.mxu0 %v325
      %338 = vmatpush.bf16.msra.mxu0 %v324
      %339 = vmatpush.bf16.msra.mxu0 %v323
      %340 = vmatpush.bf16.msra.mxu0 %v322
      %341 = vmatpush.bf16.msra.mxu0 %v321
      %342 = vmatmul.bf16.gmra.mxu0 %v117
      %v343 = vpop.f32.mrf.mxu0
      %v344 = vadd.f32 0.0, %v343
      %v345 = vpop.f32.mrf.mxu0
      %v346 = vadd.f32 0.0, %v345
      %347 = vmatmul.bf16.gmra.mxu0 %v118
      %v348 = vpop.f32.mrf.mxu0
      %v349 = vadd.f32 0.0, %v348
      %v350 = vpop.f32.mrf.mxu0
      %v351 = vadd.f32 0.0, %v350
      %352 = vmatmul.bf16.gmra.mxu0 %v119
      %v353 = vpop.f32.mrf.mxu0
      %v354 = vadd.f32 0.0, %v353
      %v355 = vpop.f32.mrf.mxu0
      %v356 = vadd.f32 0.0, %v355
      %357 = vmatmul.bf16.gmra.mxu0 %v120
      %v358 = vpop.f32.mrf.mxu0
      %v359 = vadd.f32 0.0, %v358
      %v360 = vpop.f32.mrf.mxu0
      %v361 = vadd.f32 0.0, %v360
      %362 = vmatmul.bf16.gmra.mxu0 %v121
      %v363 = vpop.f32.mrf.mxu0
      %v364 = vadd.f32 0.0, %v363
      %v365 = vpop.f32.mrf.mxu0
      %v366 = vadd.f32 0.0, %v365
      %367 = vmatmul.bf16.gmra.mxu0 %v122
      %v368 = vpop.f32.mrf.mxu0
      %v369 = vadd.f32 0.0, %v368
      %v370 = vpop.f32.mrf.mxu0
      %v371 = vadd.f32 0.0, %v370
      %372 = vmatmul.bf16.gmra.mxu0 %v123
      %v373 = vpop.f32.mrf.mxu0
      %v374 = vadd.f32 0.0, %v373
      %v375 = vpop.f32.mrf.mxu0
      %v376 = vadd.f32 0.0, %v375
      %377 = vmatmul.bf16.gmra.mxu0 %v124
      %v378 = vpop.f32.mrf.mxu0
      %v379 = vadd.f32 0.0, %v378
      %v380 = vpop.f32.mrf.mxu0
      %v381 = vadd.f32 0.0, %v380
      %382 = vdwg.mxu0
      %v383 = vpack.c.bf16 %v346, %v344
      %v384 = vpack.c.bf16 %v351, %v349
      %v385 = vpack.c.bf16 %v356, %v354
      %v386 = vpack.c.bf16 %v361, %v359
      %v387 = vpack.c.bf16 %v366, %v364
      %v388 = vpack.c.bf16 %v371, %v369
      %v389 = vpack.c.bf16 %v376, %v374
      %v390 = vpack.c.bf16 %v381, %v379
      %v392 = vperm.slane %v333, 0
      %v398 = vunpack.c.l.b16 %v329
      %v399 = vunpack.c.l.b16 %v330
      %v400 = vunpack.c.l.b16 %v331
      %v401 = vunpack.c.l.b16 %v332
      %v402 = vpack.c.b16 %v399, %v398
      %v403 = vpack.c.b16 %v401, %v400
      %vm406 = vcmask 261120
      %v408 = vsel %vm406, %v383, 0
      %v411 = vsel %vm406, %v384, 0
      %v414 = vsel %vm406, %v385, 0
      %v417 = vsel %vm406, %v386, 0
      %v420 = vsel %vm406, %v387, 0
      %v423 = vsel %vm406, %v388, 0
      %v426 = vsel %vm406, %v389, 0
      %v429 = vsel %vm406, %v390, 0
      %431 = vmatpush.bf16.msra.mxu0 0
      %432 = vmatpush.bf16.msra.mxu0 0
      %433 = vmatpush.bf16.msra.mxu0 0
      %434 = vmatpush.bf16.msra.mxu0 0
      %435 = vmatpush.bf16.msra.mxu0 0
      %436 = vmatpush.bf16.msra.mxu0 0
      %437 = vmatpush.bf16.msra.mxu0 %v403
      %438 = vmatpush.bf16.msra.mxu0 %v402
      %439 = vmatmul.bf16.gmra.mxu0 %v408
      %v440 = vpop.f32.mrf.mxu0
      %v441 = vadd.f32 %v392, %v440
      %v442 = vpop.f32.mrf.mxu0
      %v443 = vadd.f32 %v392, %v442
      %444 = vmatmul.bf16.gmra.mxu0 %v411
      %v445 = vpop.f32.mrf.mxu0
      %v446 = vadd.f32 %v392, %v445
      %v447 = vpop.f32.mrf.mxu0
      %v448 = vadd.f32 %v392, %v447
      %449 = vmatmul.bf16.gmra.mxu0 %v414
      %v450 = vpop.f32.mrf.mxu0
      %v451 = vadd.f32 %v392, %v450
      %v452 = vpop.f32.mrf.mxu0
      %v453 = vadd.f32 %v392, %v452
      %454 = vmatmul.bf16.gmra.mxu0 %v417
      %v455 = vpop.f32.mrf.mxu0
      %v456 = vadd.f32 %v392, %v455
      %v457 = vpop.f32.mrf.mxu0
      %v458 = vadd.f32 %v392, %v457
      %459 = vmatmul.bf16.gmra.mxu0 %v420
      %v460 = vpop.f32.mrf.mxu0
      %v461 = vadd.f32 %v392, %v460
      %v462 = vpop.f32.mrf.mxu0
      %v463 = vadd.f32 %v392, %v462
      %464 = vmatmul.bf16.gmra.mxu0 %v423
      %v465 = vpop.f32.mrf.mxu0
      %v466 = vadd.f32 %v392, %v465
      %v467 = vpop.f32.mrf.mxu0
      %v468 = vadd.f32 %v392, %v467
      %469 = vmatmul.bf16.gmra.mxu0 %v426
      %v470 = vpop.f32.mrf.mxu0
      %v471 = vadd.f32 %v392, %v470
      %v472 = vpop.f32.mrf.mxu0
      %v473 = vadd.f32 %v392, %v472
      %474 = vmatmul.bf16.gmra.mxu0 %v429
      %v475 = vpop.f32.mrf.mxu0
      %v476 = vadd.f32 %v392, %v475
      %v477 = vpop.f32.mrf.mxu0
      %v478 = vadd.f32 %v392, %v477
      %479 = vdwg.mxu0
      %v480 = vpack.c.bf16 %v443, %v441
      %v481 = vpack.c.bf16 %v448, %v446
      %v482 = vpack.c.bf16 %v453, %v451
      %v483 = vpack.c.bf16 %v458, %v456
      %v484 = vpack.c.bf16 %v463, %v461
      %v485 = vpack.c.bf16 %v468, %v466
      %v486 = vpack.c.bf16 %v473, %v471
      %v487 = vpack.c.bf16 %v478, %v476
      %v488 = vld [vmem:[%s6] sm:$0xf]
      %v489 = vld [vmem:[%s6 + $0x4] sm:$0xf]
      %v490 = vld [vmem:[%s6 + $0x8] sm:$0xf]
      %v491 = vld [vmem:[%s6 + $0xc] sm:$0xf]
      %v496 = vunpack.c.l.b16 %v488
      %v497 = vunpack.c.l.b16 %v489
      %v498 = vunpack.c.l.b16 %v490
      %v499 = vunpack.c.l.b16 %v491
      %v500 = vpack.c.b16 %v497, %v496
      %v501 = vpack.c.b16 %v499, %v498
      %v505 = vsel %vm406, %v480, 0
      %v508 = vsel %vm406, %v481, 0
      %v511 = vsel %vm406, %v482, 0
      %v514 = vsel %vm406, %v483, 0
      %v517 = vsel %vm406, %v484, 0
      %v520 = vsel %vm406, %v485, 0
      %v523 = vsel %vm406, %v486, 0
      %v526 = vsel %vm406, %v487, 0
      %528 = vmatpush.bf16.msra.mxu0 0
      %529 = vmatpush.bf16.msra.mxu0 0
      %530 = vmatpush.bf16.msra.mxu0 0
      %531 = vmatpush.bf16.msra.mxu0 0
      %532 = vmatpush.bf16.msra.mxu0 0
      %533 = vmatpush.bf16.msra.mxu0 0
      %534 = vmatpush.bf16.msra.mxu0 %v501
      %535 = vmatpush.bf16.msra.mxu0 %v500
      %536 = vmatmul.bf16.gmra.mxu0 %v505
      %v537 = vpop.f32.mrf.mxu0
      %v538 = vadd.f32 0.0, %v537
      %v539 = vpop.f32.mrf.mxu0
      %v540 = vadd.f32 0.0, %v539
      %541 = vmatmul.bf16.gmra.mxu0 %v508
      %v542 = vpop.f32.mrf.mxu0
      %v543 = vadd.f32 0.0, %v542
      %v544 = vpop.f32.mrf.mxu0
      %v545 = vadd.f32 0.0, %v544
      %546 = vmatmul.bf16.gmra.mxu0 %v511
      %v547 = vpop.f32.mrf.mxu0
      %v548 = vadd.f32 0.0, %v547
      %v549 = vpop.f32.mrf.mxu0
      %v550 = vadd.f32 0.0, %v549
      %551 = vmatmul.bf16.gmra.mxu0 %v514
      %v552 = vpop.f32.mrf.mxu0
      %v553 = vadd.f32 0.0, %v552
      %v554 = vpop.f32.mrf.mxu0
      %v555 = vadd.f32 0.0, %v554
      %556 = vmatmul.bf16.gmra.mxu0 %v517
      %v557 = vpop.f32.mrf.mxu0
      %v558 = vadd.f32 0.0, %v557
      %v559 = vpop.f32.mrf.mxu0
      %v560 = vadd.f32 0.0, %v559
      %561 = vmatmul.bf16.gmra.mxu0 %v520
      %v562 = vpop.f32.mrf.mxu0
      %v563 = vadd.f32 0.0, %v562
      %v564 = vpop.f32.mrf.mxu0
      %v565 = vadd.f32 0.0, %v564
      %566 = vmatmul.bf16.gmra.mxu0 %v523
      %v567 = vpop.f32.mrf.mxu0
      %v568 = vadd.f32 0.0, %v567
      %v569 = vpop.f32.mrf.mxu0
      %v570 = vadd.f32 0.0, %v569
      %571 = vmatmul.bf16.gmra.mxu0 %v526
      %v572 = vpop.f32.mrf.mxu0
      %v573 = vadd.f32 0.0, %v572
      %v574 = vpop.f32.mrf.mxu0
      %v575 = vadd.f32 0.0, %v574
      %576 = vdwg.mxu0
      %v577 = vpack.c.bf16 %v538, %v538
      %v578 = vpack.c.bf16 %v540, %v540
      %v579 = vpack.c.bf16 %v543, %v543
      %v580 = vpack.c.bf16 %v545, %v545
      %v581 = vpack.c.bf16 %v548, %v548
      %v582 = vpack.c.bf16 %v550, %v550
      %v583 = vpack.c.bf16 %v553, %v553
      %v584 = vpack.c.bf16 %v555, %v555
      %v585 = vpack.c.bf16 %v558, %v558
      %v586 = vpack.c.bf16 %v560, %v560
      %v587 = vpack.c.bf16 %v563, %v563
      %v588 = vpack.c.bf16 %v565, %v565
      %v589 = vpack.c.bf16 %v568, %v568
      %v590 = vpack.c.bf16 %v570, %v570
      %v591 = vpack.c.bf16 %v573, %v573
      %v592 = vpack.c.bf16 %v575, %v575
      %vm593 = vcmask 60416
      %594 = vst.msk [vmem:[#allocation2] sm:$0xf] %vm593, %v577
      %595 = vst.msk [vmem:[#allocation2 + $0x4] sm:$0xf] %vm593, %v578
      %596 = vst.msk [vmem:[#allocation2 + $0x8] sm:$0xf] %vm593, %v579
      %597 = vst.msk [vmem:[#allocation2 + $0xc] sm:$0xf] %vm593, %v580
      %598 = vst.msk [vmem:[#allocation2 + $0x10] sm:$0xf] %vm593, %v581
      %599 = vst.msk [vmem:[#allocation2 + $0x14] sm:$0xf] %vm593, %v582
      %600 = vst.msk [vmem:[#allocation2 + $0x18] sm:$0xf] %vm593, %v583
      %601 = vst.msk [vmem:[#allocation2 + $0x1c] sm:$0xf] %vm593, %v584
      %602 = vst.msk [vmem:[#allocation2 + $0x20] sm:$0xf] %vm593, %v585
      %603 = vst.msk [vmem:[#allocation2 + $0x24] sm:$0xf] %vm593, %v586
      %604 = vst.msk [vmem:[#allocation2 + $0x28] sm:$0xf] %vm593, %v587
      %605 = vst.msk [vmem:[#allocation2 + $0x2c] sm:$0xf] %vm593, %v588
      %606 = vst.msk [vmem:[#allocation2 + $0x30] sm:$0xf] %vm593, %v589
      %607 = vst.msk [vmem:[#allocation2 + $0x34] sm:$0xf] %vm593, %v590
      %608 = vst.msk [vmem:[#allocation2 + $0x38] sm:$0xf] %vm593, %v591
      %609 = vst.msk [vmem:[#allocation2 + $0x3c] sm:$0xf] %vm593, %v592
    $region41: #{tpu_custom_call.1} parent=1 // pred_fallthru
      _
    %s610 = smul.u32 0, 128
    %s611 = sshra.s32 %s610, 3
    %s612 = sand.u32 %s610, 7
    %s613 = smul.addr %s611, 4
    %s614 = scalar_lea.vmem %s0, %s613
    %v615 = vld [vmem:[%s614] sm:$0xf]
    %v616 = vld [vmem:[%s614 + $0x4] sm:$0xf]
    %v617 = vld [vmem:[%s614 + $0x8] sm:$0xf]
    %v618 = vld [vmem:[%s614 + $0xc] sm:$0xf]
    %v619 = vld [vmem:[%s614 + $0x10] sm:$0xf]
    %v620 = vld [vmem:[%s614 + $0x14] sm:$0xf]
    %v621 = vld [vmem:[%s614 + $0x18] sm:$0xf]
    %v622 = vld [vmem:[%s614 + $0x1c] sm:$0xf]
    %v623 = vld [vmem:[%s614 + $0x20] sm:$0xf]
    %v624 = vld [vmem:[%s614 + $0x24] sm:$0xf]
    %v625 = vld [vmem:[%s614 + $0x28] sm:$0xf]
    %v626 = vld [vmem:[%s614 + $0x2c] sm:$0xf]
    %v627 = vld [vmem:[%s614 + $0x30] sm:$0xf]
    %v628 = vld [vmem:[%s614 + $0x34] sm:$0xf]
    %v629 = vld [vmem:[%s614 + $0x38] sm:$0xf]
    %v630 = vld [vmem:[%s614 + $0x3c] sm:$0xf]
    %v631 = vld [vmem:[#allocation2] sm:$0xf]
    %v632 = vld [vmem:[#allocation2 + $0x4] sm:$0xf]
    %v633 = vld [vmem:[#allocation2 + $0x8] sm:$0xf]
    %v634 = vld [vmem:[#allocation2 + $0xc] sm:$0xf]
    %v635 = vld [vmem:[#allocation2 + $0x10] sm:$0xf]
    %v636 = vld [vmem:[#allocation2 + $0x14] sm:$0xf]
    %v637 = vld [vmem:[#allocation2 + $0x18] sm:$0xf]
    %v638 = vld [vmem:[#allocation2 + $0x1c] sm:$0xf]
    %v639 = vld [vmem:[#allocation2 + $0x20] sm:$0xf]
    %v640 = vld [vmem:[#allocation2 + $0x24] sm:$0xf]
    %v641 = vld [vmem:[#allocation2 + $0x28] sm:$0xf]
    %v642 = vld [vmem:[#allocation2 + $0x2c] sm:$0xf]
    %v643 = vld [vmem:[#allocation2 + $0x30] sm:$0xf]
    %v644 = vld [vmem:[#allocation2 + $0x34] sm:$0xf]
    %v645 = vld [vmem:[#allocation2 + $0x38] sm:$0xf]
    %v646 = vld [vmem:[#allocation2 + $0x3c] sm:$0xf]
    %v647 = vld [vmem:[%s7] sm:$0x1]
    %v649 = vperm.slane %v647, 0
    %v667 = vunpack.c.l.b16 %v615
    %v668 = vunpack.c.l.b16 %v616
    %v669 = vunpack.c.l.b16 %v617
    %v670 = vunpack.c.l.b16 %v618
    %v671 = vunpack.c.l.b16 %v619
    %v672 = vunpack.c.l.b16 %v620
    %v673 = vunpack.c.l.b16 %v621
    %v674 = vunpack.c.l.b16 %v622
    %v675 = vunpack.c.l.b16 %v623
    %v676 = vunpack.c.l.b16 %v624
    %v677 = vunpack.c.l.b16 %v625
    %v678 = vunpack.c.l.b16 %v626
    %v679 = vunpack.c.l.b16 %v627
    %v680 = vunpack.c.l.b16 %v628
    %v681 = vunpack.c.l.b16 %v629
    %v682 = vunpack.c.l.b16 %v630
    %v683 = vpack.c.b16 %v668, %v667
    %v684 = vpack.c.b16 %v670, %v669
    %v685 = vpack.c.b16 %v672, %v671
    %v686 = vpack.c.b16 %v674, %v673
    %v687 = vpack.c.b16 %v676, %v675
    %v688 = vpack.c.b16 %v678, %v677
    %v689 = vpack.c.b16 %v680, %v679
    %v690 = vpack.c.b16 %v682, %v681
    %v715 = vunpack.c.l.b16 %v631
    %v716 = vunpack.c.l.b16 %v632
    %v717 = vunpack.c.l.b16 %v633
    %v718 = vunpack.c.l.b16 %v634
    %v719 = vunpack.c.l.b16 %v635
    %v720 = vunpack.c.l.b16 %v636
    %v721 = vunpack.c.l.b16 %v637
    %v722 = vunpack.c.l.b16 %v638
    %v723 = vunpack.c.l.b16 %v639
    %v724 = vunpack.c.l.b16 %v640
    %v725 = vunpack.c.l.b16 %v641
    %v726 = vunpack.c.l.b16 %v642
    %v727 = vunpack.c.l.b16 %v643
    %v728 = vunpack.c.l.b16 %v644
    %v729 = vunpack.c.l.b16 %v645
    %v730 = vunpack.c.l.b16 %v646
    %v731 = vpack.c.b16 %v716, %v715
    %v732 = vpack.c.b16 %v718, %v717
    %v733 = vpack.c.b16 %v720, %v719
    %v734 = vpack.c.b16 %v722, %v721
    %v735 = vpack.c.b16 %v724, %v723
    %v736 = vpack.c.b16 %v726, %v725
    %v737 = vpack.c.b16 %v728, %v727
    %v738 = vpack.c.b16 %v730, %v729
    %747 = vmatpush.bf16.msra.mxu0 %v738
    %748 = vmatpush.bf16.msra.mxu0 %v737
    %749 = vmatpush.bf16.msra.mxu0 %v736
    %750 = vmatpush.bf16.msra.mxu0 %v735
    %751 = vmatpush.bf16.msra.mxu0 %v734
    %752 = vmatpush.bf16.msra.mxu0 %v733
    %753 = vmatpush.bf16.msra.mxu0 %v732
    %754 = vmatpush.bf16.msra.mxu0 %v731
    %755 = vmatmul.bf16.gmra.mxu0 %v683
    %v756 = vpop.f32.mrf.mxu0
    %v757 = vadd.f32 %v649, %v756
    %v758 = vpop.f32.mrf.mxu0
    %v759 = vadd.f32 %v649, %v758
    %760 = vmatmul.bf16.gmra.mxu0 %v684
    %v761 = vpop.f32.mrf.mxu0
    %v762 = vadd.f32 %v649, %v761
    %v763 = vpop.f32.mrf.mxu0
    %v764 = vadd.f32 %v649, %v763
    %765 = vmatmul.bf16.gmra.mxu0 %v685
    %v766 = vpop.f32.mrf.mxu0
    %v767 = vadd.f32 %v649, %v766
    %v768 = vpop.f32.mrf.mxu0
    %v769 = vadd.f32 %v649, %v768
    %770 = vmatmul.bf16.gmra.mxu0 %v686
    %v771 = vpop.f32.mrf.mxu0
    %v772 = vadd.f32 %v649, %v771
    %v773 = vpop.f32.mrf.mxu0
    %v774 = vadd.f32 %v649, %v773
    %775 = vmatmul.bf16.gmra.mxu0 %v687
    %v776 = vpop.f32.mrf.mxu0
    %v777 = vadd.f32 %v649, %v776
    %v778 = vpop.f32.mrf.mxu0
    %v779 = vadd.f32 %v649, %v778
    %780 = vmatmul.bf16.gmra.mxu0 %v688
    %v781 = vpop.f32.mrf.mxu0
    %v782 = vadd.f32 %v649, %v781
    %v783 = vpop.f32.mrf.mxu0
    %v784 = vadd.f32 %v649, %v783
    %785 = vmatmul.bf16.gmra.mxu0 %v689
    %v786 = vpop.f32.mrf.mxu0
    %v787 = vadd.f32 %v649, %v786
    %v788 = vpop.f32.mrf.mxu0
    %v789 = vadd.f32 %v649, %v788
    %790 = vmatmul.bf16.gmra.mxu0 %v690
    %v791 = vpop.f32.mrf.mxu0
    %v792 = vadd.f32 %v649, %v791
    %v793 = vpop.f32.mrf.mxu0
    %v794 = vadd.f32 %v649, %v793
    %795 = vdwg.mxu0
    %vm796 = vcmask 64512
    %v797 = vsel %vm796, %v757, -inf
    %798 = vmax.xlane.f32.xlu0 %v797
    %v799 = vpop.xlane.xlu0 %798
    %v800 = vsel %vm796, %v759, -inf
    %801 = vmax.xlane.f32.xlu0 %v800
    %v802 = vpop.xlane.xlu0 %801
    %v803 = vsel %vm796, %v762, -inf
    %804 = vmax.xlane.f32.xlu0 %v803
    %v805 = vpop.xlane.xlu0 %804
    %v806 = vsel %vm796, %v764, -inf
    %807 = vmax.xlane.f32.xlu0 %v806
    %v808 = vpop.xlane.xlu0 %807
    %v809 = vsel %vm796, %v767, -inf
    %810 = vmax.xlane.f32.xlu0 %v809
    %v811 = vpop.xlane.xlu0 %810
    %v812 = vsel %vm796, %v769, -inf
    %813 = vmax.xlane.f32.xlu0 %v812
    %v814 = vpop.xlane.xlu0 %813
    %v815 = vsel %vm796, %v772, -inf
    %816 = vmax.xlane.f32.xlu0 %v815
    %v817 = vpop.xlane.xlu0 %816
    %v818 = vsel %vm796, %v774, -inf
    %819 = vmax.xlane.f32.xlu0 %v818
    %v820 = vpop.xlane.xlu0 %819
    %v821 = vsel %vm796, %v777, -inf
    %822 = vmax.xlane.f32.xlu0 %v821
    %v823 = vpop.xlane.xlu0 %822
    %v824 = vsel %vm796, %v779, -inf
    %825 = vmax.xlane.f32.xlu0 %v824
    %v826 = vpop.xlane.xlu0 %825
    %v827 = vsel %vm796, %v782, -inf
    %828 = vmax.xlane.f32.xlu0 %v827
    %v829 = vpop.xlane.xlu0 %828
    %v830 = vsel %vm796, %v784, -inf
    %831 = vmax.xlane.f32.xlu0 %v830
    %v832 = vpop.xlane.xlu0 %831
    %v833 = vsel %vm796, %v787, -inf
    %834 = vmax.xlane.f32.xlu0 %v833
    %v835 = vpop.xlane.xlu0 %834
    %v836 = vsel %vm796, %v789, -inf
    %837 = vmax.xlane.f32.xlu0 %v836
    %v838 = vpop.xlane.xlu0 %837
    %v839 = vsel %vm796, %v792, -inf
    %840 = vmax.xlane.f32.xlu0 %v839
    %v841 = vpop.xlane.xlu0 %840
    %v842 = vsel %vm796, %v794, -inf
    %843 = vmax.xlane.f32.xlu0 %v842
    %v844 = vpop.xlane.xlu0 %843
    %v845 = vsub.f32 %v757, %v799
    %v846 = vsub.f32 %v759, %v802
    %v847 = vsub.f32 %v762, %v805
    %v848 = vsub.f32 %v764, %v808
    %v849 = vsub.f32 %v767, %v811
    %v850 = vsub.f32 %v769, %v814
    %v851 = vsub.f32 %v772, %v817
    %v852 = vsub.f32 %v774, %v820
    %v853 = vsub.f32 %v777, %v823
    %v854 = vsub.f32 %v779, %v826
    %v855 = vsub.f32 %v782, %v829
    %v856 = vsub.f32 %v784, %v832
    %v857 = vsub.f32 %v787, %v835
    %v858 = vsub.f32 %v789, %v838
    %v859 = vsub.f32 %v792, %v841
    %v860 = vsub.f32 %v794, %v844
    %v861 = vmul.f32 %v845, 1.442695
    %v862 = vpow.pop %v861
    %v863 = vmul.f32 %v846, 1.442695
    %v864 = vpow.pop %v863
    %v865 = vmul.f32 %v847, 1.442695
    %v866 = vpow.pop %v865
    %v867 = vmul.f32 %v848, 1.442695
    %v868 = vpow.pop %v867
    %v869 = vmul.f32 %v849, 1.442695
    %v870 = vpow.pop %v869
    %v871 = vmul.f32 %v850, 1.442695
    %v872 = vpow.pop %v871
    %v873 = vmul.f32 %v851, 1.442695
    %v874 = vpow.pop %v873
    %v875 = vmul.f32 %v852, 1.442695
    %v876 = vpow.pop %v875
    %v877 = vmul.f32 %v853, 1.442695
    %v878 = vpow.pop %v877
    %v879 = vmul.f32 %v854, 1.442695
    %v880 = vpow.pop %v879
    %v881 = vmul.f32 %v855, 1.442695
    %v882 = vpow.pop %v881
    %v883 = vmul.f32 %v856, 1.442695
    %v884 = vpow.pop %v883
    %v885 = vmul.f32 %v857, 1.442695
    %v886 = vpow.pop %v885
    %v887 = vmul.f32 %v858, 1.442695
    %v888 = vpow.pop %v887
    %v889 = vmul.f32 %v859, 1.442695
    %v890 = vpow.pop %v889
    %v891 = vmul.f32 %v860, 1.442695
    %v892 = vpow.pop %v891
    %v893 = vsel %vm796, %v862, 0.0
    %894 = vadd.xlane.f32.xlu0 %v893
    %v895 = vpop.xlane.xlu0 %894
    %v896 = vsel %vm796, %v864, 0.0
    %897 = vadd.xlane.f32.xlu0 %v896
    %v898 = vpop.xlane.xlu0 %897
    %v899 = vsel %vm796, %v866, 0.0
    %900 = vadd.xlane.f32.xlu0 %v899
    %v901 = vpop.xlane.xlu0 %900
    %v902 = vsel %vm796, %v868, 0.0
    %903 = vadd.xlane.f32.xlu0 %v902
    %v904 = vpop.xlane.xlu0 %903
    %v905 = vsel %vm796, %v870, 0.0
    %906 = vadd.xlane.f32.xlu0 %v905
    %v907 = vpop.xlane.xlu0 %906
    %v908 = vsel %vm796, %v872, 0.0
    %909 = vadd.xlane.f32.xlu0 %v908
    %v910 = vpop.xlane.xlu0 %909
    %v911 = vsel %vm796, %v874, 0.0
    %912 = vadd.xlane.f32.xlu0 %v911
    %v913 = vpop.xlane.xlu0 %912
    %v914 = vsel %vm796, %v876, 0.0
    %915 = vadd.xlane.f32.xlu0 %v914
    %v916 = vpop.xlane.xlu0 %915
    %v917 = vsel %vm796, %v878, 0.0
    %918 = vadd.xlane.f32.xlu0 %v917
    %v919 = vpop.xlane.xlu0 %918
    %v920 = vsel %vm796, %v880, 0.0
    %921 = vadd.xlane.f32.xlu0 %v920
    %v922 = vpop.xlane.xlu0 %921
    %v923 = vsel %vm796, %v882, 0.0
    %924 = vadd.xlane.f32.xlu0 %v923
    %v925 = vpop.xlane.xlu0 %924
    %v926 = vsel %vm796, %v884, 0.0
    %927 = vadd.xlane.f32.xlu0 %v926
    %v928 = vpop.xlane.xlu0 %927
    %v929 = vsel %vm796, %v886, 0.0
    %930 = vadd.xlane.f32.xlu0 %v929
    %v931 = vpop.xlane.xlu0 %930
    %v932 = vsel %vm796, %v888, 0.0
    %933 = vadd.xlane.f32.xlu0 %v932
    %v934 = vpop.xlane.xlu0 %933
    %v935 = vsel %vm796, %v890, 0.0
    %936 = vadd.xlane.f32.xlu0 %v935
    %v937 = vpop.xlane.xlu0 %936
    %v938 = vsel %vm796, %v892, 0.0
    %939 = vadd.xlane.f32.xlu0 %v938
    %v940 = vpop.xlane.xlu0 %939
    %v941 = vrcp.pop %v895
    %v942 = vrcp.pop %v898
    %v943 = vrcp.pop %v901
    %v944 = vrcp.pop %v904
    %v945 = vrcp.pop %v907
    %v946 = vrcp.pop %v910
    %v947 = vrcp.pop %v913
    %v948 = vrcp.pop %v916
    %v949 = vrcp.pop %v919
    %v950 = vrcp.pop %v922
    %v951 = vrcp.pop %v925
    %v952 = vrcp.pop %v928
    %v953 = vrcp.pop %v931
    %v954 = vrcp.pop %v934
    %v955 = vrcp.pop %v937
    %v956 = vrcp.pop %v940
    %v957 = vmul.f32 %v862, %v941
    %v958 = vmul.f32 %v864, %v942
    %v959 = vmul.f32 %v866, %v943
    %v960 = vmul.f32 %v868, %v944
    %v961 = vmul.f32 %v870, %v945
    %v962 = vmul.f32 %v872, %v946
    %v963 = vmul.f32 %v874, %v947
    %v964 = vmul.f32 %v876, %v948
    %v965 = vmul.f32 %v878, %v949
    %v966 = vmul.f32 %v880, %v950
    %v967 = vmul.f32 %v882, %v951
    %v968 = vmul.f32 %v884, %v952
    %v969 = vmul.f32 %v886, %v953
    %v970 = vmul.f32 %v888, %v954
    %v971 = vmul.f32 %v890, %v955
    %v972 = vmul.f32 %v892, %v956
    %973 = vst.msk [vmem:[%s8] sm:$0xff] %vm796, %v957
    %974 = vst.msk [vmem:[%s8 + $0x8] sm:$0xff] %vm796, %v958
    %975 = vst.msk [vmem:[%s8 + $0x10] sm:$0xff] %vm796, %v959
    %976 = vst.msk [vmem:[%s8 + $0x18] sm:$0xff] %vm796, %v960
    %977 = vst.msk [vmem:[%s8 + $0x20] sm:$0xff] %vm796, %v961
    %978 = vst.msk [vmem:[%s8 + $0x28] sm:$0xff] %vm796, %v962
    %979 = vst.msk [vmem:[%s8 + $0x30] sm:$0xff] %vm796, %v963
    %980 = vst.msk [vmem:[%s8 + $0x38] sm:$0xff] %vm796, %v964
    %981 = vst.msk [vmem:[%s8 + $0x40] sm:$0xff] %vm796, %v965
    %982 = vst.msk [vmem:[%s8 + $0x48] sm:$0xff] %vm796, %v966
    %983 = vst.msk [vmem:[%s8 + $0x50] sm:$0xff] %vm796, %v967
    %984 = vst.msk [vmem:[%s8 + $0x58] sm:$0xff] %vm796, %v968
    %985 = vst.msk [vmem:[%s8 + $0x60] sm:$0xff] %vm796, %v969
    %986 = vst.msk [vmem:[%s8 + $0x68] sm:$0xff] %vm796, %v970
    %987 = vst.msk [vmem:[%s8 + $0x70] sm:$0xff] %vm796, %v971
    %988 = vst.msk [vmem:[%s8 + $0x78] sm:$0xff] %vm796, %v972
    // Predicated region
    $region42: #{tpu_custom_call.1} parent=1 // pred_check
      _
    $region43: #{tpu_custom_call.1} parent=1 // pred_check_branch
      %990 = sbr.rel (0) target = $region45
    $region44: #{tpu_custom_call.1} parent=1 // pred_region
      _
    $region45: #{tpu_custom_call.1} parent=1 // pred_fallthru
      _
    // Predicated region
    $region46: #{tpu_custom_call.1} parent=1 // pred_check
      _
    $region47: #{tpu_custom_call.1} parent=1 // pred_check_branch
      %992 = sbr.rel (0) target = $region49
    $region48: #{tpu_custom_call.1} parent=1 // pred_region
      _
    $region49: #{tpu_custom_call.1} parent=1 // pred_fallthru
      _
    %993 = vsyncpa [#allocation4], 1

</llo_original>
